<compile_context>
chip_gen: v5e
topology: v5e:2x2
jax: 0.10.0
libtpu: 0.0.40
codegen_flags: <defaults>
</compile_context>

<pallas_src>
import functools

import jax
import jax.numpy as jnp
from jax.experimental import pallas as pl
from jax.experimental.pallas import tpu as pltpu

_SUBLANE = 8


def _jsd_block_kernel(x_ref, y_ref, out_ref, *, valid_b, block_b):
    """Partial (unnormalized) JSD sum for one batch tile.

    x_ref, y_ref: (block_b, C) logit tiles, class axis last (lanes).
    out_ref:      (1, 1) f32 SMEM scalar -> this block's partial
                  sum( m * (2*log m - log_softmax(x) - log_softmax(y)) ).
    """
    x = x_ref[...].astype(jnp.float32)
    y = y_ref[...].astype(jnp.float32)

    def softmax_parts(z):
        # One exp per element, reused for both p and log p.
        z = z - jnp.max(z, axis=-1, keepdims=True)
        e = jnp.exp(z)
        s = jnp.sum(e, axis=-1, keepdims=True)      # (block_b, 1)
        inv_s = 1.0 / s                             # per-row divide only
        p = e * inv_s
        logp = z - jnp.log(s)
        return p, logp

    p1, logp1 = softmax_parts(x)
    p2, logp2 = softmax_parts(y)

    m = 0.5 * (p1 + p2)

    # PyTorch's kl_div zeroes target == 0 entries.  Guard log(0): where m == 0
    # (f32 underflow), log_m is replaced by 0 so contrib = 0 * finite = 0.
    log_m = jnp.log(jnp.where(m > 0.0, m, 1.0))
    contrib = m * (2.0 * log_m - logp1 - logp2)

    # Lane-axis reduction first, then mask ragged batch rows on the small
    # (block_b, 1) vector.  jnp.where is a select, so any NaN/Inf produced by
    # garbage out-of-bounds rows in the last block cannot reach the sum.
    row_sum = jnp.sum(contrib, axis=-1, keepdims=True)          # (block_b, 1)
    row_ids = (pl.program_id(0) * block_b
               + jax.lax.broadcasted_iota(jnp.int32, (block_b, 1), 0))
    row_sum = jnp.where(row_ids < valid_b, row_sum, 0.0)

    out_ref[0, 0] = jnp.sum(row_sum)


def _cdiv(a, b):
    return -(-a // b)


def _round_up(a, b):
    return _cdiv(a, b) * b


def _choose_tiling(b, c, itemsize):
    """Pick (block_b, num_blocks, vmem_limit_bytes), generation-aware."""
    try:
        cap = int(pltpu.get_tpu_info().vmem_capacity_bytes)
    except Exception:
        cap = 64 * 1024 * 1024  # conservative: v7x per-TC physical VMEM

    # ~24 MiB working-set target (2 inputs x 2 pipeline buffers + ~8 f32
    # full-tile temporaries), but never more than ~1/3 of physical VMEM.
    budget = min(24 * 1024 * 1024, cap // 3)

    # Sublane packing: f32 -> 8-row alignment, bf16 -> 16, int8/fp8 -> 32.
    align = max(_SUBLANE, 32 // max(1, itemsize))

    per_row = c * (2 * 2 * itemsize + 8 * 4)
    block_b = max(align, (budget // per_row) // align * align)

    # Guarantee >= 2 grid blocks when the batch allows it, so the "parallel"
    # batch axis can be split across v7x's two TensorCores.
    if b > align:
        half = _round_up(_cdiv(b, 2), align)
        block_b = min(block_b, half)

    # Never bigger than the (alignment-rounded) batch itself.
    block_b = min(block_b, _round_up(b, align))
    block_b = max(block_b, align)

    num_blocks = _cdiv(b, block_b)

    # Explicit VMEM limit: cover the chosen working set (+ headroom), stay
    # under physical capacity.  Raising this matters on v5e (16 MiB default).
    vmem_limit = min(cap, max(block_b * per_row, budget) + (2 * 1024 * 1024))
    return int(block_b), int(num_blocks), int(vmem_limit)


def jsd(net_1_logits, net_2_logits):
    assert net_1_logits.shape == net_2_logits.shape
    assert net_1_logits.ndim == 2, "expected (B, C) logits with class axis last"
    b, c = net_1_logits.shape

    itemsize = jnp.dtype(net_1_logits.dtype).itemsize
    block_b, num_blocks, vmem_limit = _choose_tiling(b, c, itemsize)

    partials = pl.pallas_call(
        functools.partial(_jsd_block_kernel, valid_b=b, block_b=block_b),
        out_shape=jax.ShapeDtypeStruct((num_blocks, 1), jnp.float32),
        grid=(num_blocks,),
        in_specs=[
            pl.BlockSpec((block_b, c), lambda i: (i, 0)),
            pl.BlockSpec((block_b, c), lambda i: (i, 0)),
        ],
        out_specs=pl.BlockSpec((1, 1), lambda i: (i, 0),
                               memory_space=pltpu.SMEM),
        compiler_params=pltpu.CompilerParams(
            dimension_semantics=("parallel",),
            vmem_limit_bytes=vmem_limit),
    )(net_1_logits, net_2_logits)

    # reduction='batchmean' divides by the ORIGINAL batch size; final 0.5 factor.
    return 0.5 * jnp.sum(partials) / jnp.float32(b)


def _jsd_ref(x, y):
    # Pure-JAX reference for sanity checking.
    x = x.astype(jnp.float32)
    y = y.astype(jnp.float32)
    logp1 = jax.nn.log_softmax(x, axis=-1)
    logp2 = jax.nn.log_softmax(y, axis=-1)
    p1, p2 = jnp.exp(logp1), jnp.exp(logp2)
    m = 0.5 * (p1 + p2)
    b = x.shape[0]
    kl1 = jnp.sum(m * (jnp.log(m) - logp1)) / b
    kl2 = jnp.sum(m * (jnp.log(m) - logp2)) / b
    return 0.5 * (kl1 + kl2)


if __name__ == "__main__":
    key = jax.random.PRNGKey(0)
    k1, k2, k3, k4, k5, k6 = jax.random.split(key, 6)

    # Small (batch, classes) logits, matching the PyTorch module's dim=1 softmax.
    B, C = 8, 32
    x1 = jax.random.normal(k1, (B, C), dtype=jnp.float32)
    y1 = jax.random.normal(k2, (B, C), dtype=jnp.float32)
    out1 = jax.block_until_ready(jsd(x1, y1))
    ref1 = jax.block_until_ready(_jsd_ref(x1, y1))
    assert jnp.allclose(out1, ref1, rtol=1e-5, atol=1e-6), (out1, ref1)

    # Non-multiple-of-128 class axis and ragged batch block (13 rows, 2 blocks).
    B2, C2 = 13, 200
    x2 = jax.random.normal(k3, (B2, C2), dtype=jnp.float32)
    y2 = jax.random.normal(k4, (B2, C2), dtype=jnp.float32)
    out2 = jax.block_until_ready(jsd(x2, y2))
    ref2 = jax.block_until_ready(_jsd_ref(x2, y2))
    assert jnp.allclose(out2, ref2, rtol=1e-5, atol=1e-6), (out2, ref2)

    # bf16 inputs: exercises the 16-row sublane alignment and in-kernel f32 cast.
    B3, C3 = 24, 160
    x3 = jax.random.normal(k5, (B3, C3), dtype=jnp.float32).astype(jnp.bfloat16)
    y3 = jax.random.normal(k6, (B3, C3), dtype=jnp.float32).astype(jnp.bfloat16)
    out3 = jax.block_until_ready(jsd(x3, y3))
    ref3 = jax.block_until_ready(_jsd_ref(x3, y3))
    assert jnp.allclose(out3, ref3, rtol=1e-4, atol=1e-5), (out3, ref3)

    print("KERNEL_OK")
</pallas_src>

<mosaic_0001>
module attributes {stable_mosaic.version = 11 : i64} {
  func.func @_jsd_block_kernel(%arg0: i32, %arg1: memref<8x32xf32, #tpu.memory_space<vmem>>, %arg2: memref<8x32xf32, #tpu.memory_space<vmem>>, %arg3: memref<1x1xf32, #tpu.memory_space<smem>>) attributes {dimension_semantics = [#tpu.dimension_semantics<parallel>], iteration_bounds = array<i64: 1>, scalar_prefetch = 0 : i64, scratch_operands = 0 : i64, tpu.core_type = #tpu.core_type<tc>, window_params = [{transform_indices = @transform_0, window_bounds = array<i64: 8, 32>}, {transform_indices = @transform_1, window_bounds = array<i64: 8, 32>}, {transform_indices = @transform_2, window_bounds = array<i64: 1, 1>}]} {
    %c0 = arith.constant 0 : index
    %c0_0 = arith.constant 0 : index
    %0 = vector.load %arg1[%c0, %c0_0] : memref<8x32xf32, #tpu.memory_space<vmem>>, vector<8x32xf32>
    %c0_1 = arith.constant 0 : index
    %c0_2 = arith.constant 0 : index
    %1 = vector.load %arg2[%c0_1, %c0_2] : memref<8x32xf32, #tpu.memory_space<vmem>>, vector<8x32xf32>
    %cst = arith.constant dense<0xFF800000> : vector<8xf32>
    %2 = vector.multi_reduction <maximumf>, %0, %cst [1] : vector<8x32xf32> to vector<8xf32>
    %3 = vector.shape_cast %2 : vector<8xf32> to vector<8x1xf32>
    %4 = vector.broadcast %3 : vector<8x1xf32> to vector<8x32xf32>
    %5 = arith.subf %0, %4 : vector<8x32xf32>
    %6 = math.exp %5 : vector<8x32xf32>
    %cst_3 = arith.constant dense<0.000000e+00> : vector<8xf32>
    %7 = vector.multi_reduction <add>, %6, %cst_3 [1] : vector<8x32xf32> to vector<8xf32>
    %8 = vector.shape_cast %7 : vector<8xf32> to vector<8x1xf32>
    %cst_4 = arith.constant 1.000000e+00 : f32
    %9 = vector.broadcast %cst_4 : f32 to vector<8x1xf32>
    %10 = arith.divf %9, %8 : vector<8x1xf32>
    %11 = vector.broadcast %10 : vector<8x1xf32> to vector<8x32xf32>
    %12 = arith.mulf %6, %11 : vector<8x32xf32>
    %13 = math.log %8 : vector<8x1xf32>
    %14 = vector.broadcast %13 : vector<8x1xf32> to vector<8x32xf32>
    %15 = arith.subf %5, %14 : vector<8x32xf32>
    %cst_5 = arith.constant dense<0xFF800000> : vector<8xf32>
    %16 = vector.multi_reduction <maximumf>, %1, %cst_5 [1] : vector<8x32xf32> to vector<8xf32>
    %17 = vector.shape_cast %16 : vector<8xf32> to vector<8x1xf32>
    %18 = vector.broadcast %17 : vector<8x1xf32> to vector<8x32xf32>
    %19 = arith.subf %1, %18 : vector<8x32xf32>
    %20 = math.exp %19 : vector<8x32xf32>
    %cst_6 = arith.constant dense<0.000000e+00> : vector<8xf32>
    %21 = vector.multi_reduction <add>, %20, %cst_6 [1] : vector<8x32xf32> to vector<8xf32>
    %22 = vector.shape_cast %21 : vector<8xf32> to vector<8x1xf32>
    %cst_7 = arith.constant 1.000000e+00 : f32
    %23 = vector.broadcast %cst_7 : f32 to vector<8x1xf32>
    %24 = arith.divf %23, %22 : vector<8x1xf32>
    %25 = vector.broadcast %24 : vector<8x1xf32> to vector<8x32xf32>
    %26 = arith.mulf %20, %25 : vector<8x32xf32>
    %27 = math.log %22 : vector<8x1xf32>
    %28 = vector.broadcast %27 : vector<8x1xf32> to vector<8x32xf32>
    %29 = arith.subf %19, %28 : vector<8x32xf32>
    %30 = arith.addf %12, %26 : vector<8x32xf32>
    %cst_8 = arith.constant 5.000000e-01 : f32
    %31 = vector.broadcast %cst_8 : f32 to vector<8x32xf32>
    %32 = arith.mulf %31, %30 : vector<8x32xf32>
    %cst_9 = arith.constant 0.000000e+00 : f32
    %33 = vector.broadcast %cst_9 : f32 to vector<8x32xf32>
    %34 = arith.cmpf ogt, %32, %33 : vector<8x32xf32>
    %cst_10 = arith.constant 1.000000e+00 : f32
    %35 = vector.broadcast %cst_10 : f32 to vector<8x32xf32>
    %36 = arith.select %34, %32, %35 : vector<8x32xi1>, vector<8x32xf32>
    %37 = math.log %36 : vector<8x32xf32>
    %cst_11 = arith.constant 2.000000e+00 : f32
    %38 = vector.broadcast %cst_11 : f32 to vector<8x32xf32>
    %39 = arith.mulf %38, %37 : vector<8x32xf32>
    %40 = arith.subf %39, %15 : vector<8x32xf32>
    %41 = arith.subf %40, %29 : vector<8x32xf32>
    %42 = arith.mulf %32, %41 : vector<8x32xf32>
    %cst_12 = arith.constant dense<0.000000e+00> : vector<8xf32>
    %43 = vector.multi_reduction <add>, %42, %cst_12 [1] : vector<8x32xf32> to vector<8xf32>
    %44 = vector.shape_cast %43 : vector<8xf32> to vector<8x1xf32>
    %c8_i32 = arith.constant 8 : i32
    %45 = arith.muli %arg0, %c8_i32 : i32
    %46 = tpu.iota {dimensions = array<i32: 0>} : vector<8x1xi32>
    %47 = vector.broadcast %45 : i32 to vector<8x1xi32>
    %48 = arith.addi %47, %46 : vector<8x1xi32>
    %c8_i32_13 = arith.constant 8 : i32
    %49 = vector.broadcast %c8_i32_13 : i32 to vector<8x1xi32>
    %50 = arith.cmpi slt, %48, %49 : vector<8x1xi32>
    %cst_14 = arith.constant 0.000000e+00 : f32
    %51 = vector.broadcast %cst_14 : f32 to vector<8x1xf32>
    %52 = arith.select %50, %44, %51 : vector<8x1xi1>, vector<8x1xf32>
    %53 = vector.shape_cast %52 : vector<8x1xf32> to vector<1x8x1xf32>
    %cst_15 = arith.constant dense<0.000000e+00> : vector<1xf32>
    %54 = vector.multi_reduction <add>, %53, %cst_15 [1, 2] : vector<1x8x1xf32> to vector<1xf32>
    %55 = vector.shape_cast %54 : vector<1xf32> to vector<1x1x1xf32>
    %56 = vector.extract %55[0, 0, 0] : f32 from vector<1x1x1xf32>
    %c0_16 = arith.constant 0 : index
    %c0_17 = arith.constant 0 : index
    %57 = memref.load %arg3[%c0_16, %c0_17] : memref<1x1xf32, #tpu.memory_space<smem>>
    memref.store %56, %arg3[%c0_16, %c0_17] : memref<1x1xf32, #tpu.memory_space<smem>>
    return
  }
  func.func @transform_0(%arg0: i32) -> (i32, i32) {
    %c0_i32 = arith.constant 0 : i32
    %c0_i32_0 = arith.constant 0 : i32
    return %arg0, %c0_i32 : i32, i32
  }
  func.func @transform_1(%arg0: i32) -> (i32, i32) {
    %c0_i32 = arith.constant 0 : i32
    %c0_i32_0 = arith.constant 0 : i32
    return %arg0, %c0_i32 : i32, i32
  }
  func.func @transform_2(%arg0: i32) -> (i32, i32) {
    %c0_i32 = arith.constant 0 : i32
    %c0_i32_0 = arith.constant 0 : i32
    return %arg0, %c0_i32 : i32, i32
  }
}

</mosaic_0001>

<llo_original>
// kernel: tpu_custom_call.1
$region0: #{tpu_custom_call.1}
  #allocation0 [shape = 'u32[]', space=smem, size = 0x4, offset = 0x4, fixed_abs, tag = 'smem constant byte address 0x4 - core index']
  #allocation1 [shape = 'u32[72,128]{1,0:T(1,128)}', space=vmem, size = 0x9000, scoped, tag = 'internal scratch']
  %s0 = inlined_call_operand.hbm [shape: f32[8,32], index: 0, kind: input, shape index: {}]
  %s1 = inlined_call_operand.hbm [shape: f32[8,32], index: 1, kind: input, shape index: {}]
  %s2 = inlined_call_operand.hbm [shape: f32[1,1], index: 2, kind: output, shape index: {}]
  %s3 = sld [smem:[#allocation0]]
  $region26: #{tpu_custom_call.1} parent=0
    _
  %s5 = ssub.s32 1, %s3
  %s6 = scalar_select 0, %s5, %s3
  $region1: #{tpu_custom_call.1} parent=0
    #allocation2 [shape = 'u8[4096]{0}', space=vmem, size = 0x1000, scoped, tag = 'input window, operand 0, single buffered']
    #allocation3 [shape = 's32[1]{0}', space=sflag, size = 0x4, scoped, tag = 'scoped memory for tpu_custom_call.1']
    #allocation4 [shape = 's32[1]{0}', space=sflag, size = 0x4, scoped, tag = 'scoped memory for tpu_custom_call.1']
    #allocation5 [shape = 'u8[4096]{0}', space=vmem, size = 0x1000, scoped, tag = 'input window, operand 1, single buffered']
    #allocation6 [shape = 's32[1]{0}', space=sflag, size = 0x4, scoped, tag = 'scoped memory for tpu_custom_call.1']
    #allocation7 [shape = 'u8[512]{0}', space=smem, size = 0x200, scoped, tag = 'output window, operand 0, single buffered']
    %7 = vsyncpa [#allocation3], 0
    %8 = vsyncpa [#allocation6], 0
    %9 = vsyncpa [#allocation4], 0
    // Predicated region
    $region2: #{tpu_custom_call.1} parent=1 // pred_check
      _
    $region3: #{tpu_custom_call.1} parent=1 // pred_check_branch
      %11 = sbr.rel (0) target = $region5
    $region4: #{tpu_custom_call.1} parent=1 // pred_region
      %13 = vsyncadd [#allocation3], 0
      %s15 = sshll.u32 %s0, 4
      %s16 = int_to_ptr.hbm [resolvable:$true] %s15
      %s17 = sshll.u32 [#allocation2], 4
      %s18 = int_to_ptr.vmem [resolvable:$true] %s17
      %20 = dma.hbm_to_vmem [thread:$0]  %s16, 128, %s18, [#allocation3]
    $region5: #{tpu_custom_call.1} parent=1 // pred_fallthru
      _
    // Predicated region
    $region6: #{tpu_custom_call.1} parent=1 // pred_check
      _
    $region7: #{tpu_custom_call.1} parent=1 // pred_check_branch
      %22 = sbr.rel (0) target = $region9
    $region8: #{tpu_custom_call.1} parent=1 // pred_region
      %24 = vsyncadd [#allocation6], 0
      %s26 = sshll.u32 %s1, 4
      %s27 = int_to_ptr.hbm [resolvable:$true] %s26
      %s28 = sshll.u32 [#allocation5], 4
      %s29 = int_to_ptr.vmem [resolvable:$true] %s28
      %31 = dma.hbm_to_vmem [thread:$0]  %s27, 128, %s29, [#allocation6]
    $region9: #{tpu_custom_call.1} parent=1 // pred_fallthru
      _
    // Predicated region
    $region10: #{tpu_custom_call.1} parent=1 // pred_check
      _
    $region11: #{tpu_custom_call.1} parent=1 // pred_check_branch
      %33 = sbr.rel (0) target = $region13
    $region12: #{tpu_custom_call.1} parent=1 // pred_region
      %35 = dma.done [#allocation3], 128
    $region13: #{tpu_custom_call.1} parent=1 // pred_fallthru
      _
    // Predicated region
    $region14: #{tpu_custom_call.1} parent=1 // pred_check
      _
    $region15: #{tpu_custom_call.1} parent=1 // pred_check_branch
      %37 = sbr.rel (0) target = $region17
    $region16: #{tpu_custom_call.1} parent=1 // pred_region
      %39 = dma.done [#allocation6], 128
    $region17: #{tpu_custom_call.1} parent=1 // pred_fallthru
      _
    %v40 = vld [vmem:[#allocation2] sm:$0xff]
    %v41 = vld [vmem:[#allocation5] sm:$0xff]
    %vm42 = vcmask 261120
    %v43 = vsel %vm42, %v40, -inf
    %44 = vmax.xlane.f32.xlu0 %v43
    %v45 = vpop.xlane.xlu0 %44
    %v46 = vsub.f32 %v40, %v45
    %v47 = vmul.f32 %v46, 1.442695
    %v48 = vpow.pop %v47
    %v49 = vsel %vm42, %v48, 0.0
    %50 = vadd.xlane.f32.xlu0 %v49
    %v51 = vpop.xlane.xlu0 %50
    %v52 = vrcp.pop %v51
    %v53 = vmul.f32 %v51, %v52
    %v54 = vsub.f32 1.0, %v53
    %v55 = vmul.f32 %v52, %v54
    %v56 = vadd.f32 %v52, %v55
    %vm57 = vweird.f32 %v51
    %vm58 = vweird.f32 %v52
    %vm59 = vmor %vm57, %vm58
    %v60 = vsel %vm59, %v52, %v56
    %v61 = vand.u32 2147483647, %v51
    %vm62 = vcmp.eq.f32.partialorder %v61, 8.507059e+37
    %v63 = vand.u32 %v51, 2147483648
    %v64 = vor.u32 1.1754944e-38, %v63
    %v65 = vsel %vm62, %v64, %v60
    %v66 = vmul.f32 1.0, %v65
    %v67 = vmul.f32 %v48, %v66
    %v68 = vlog2.pop %v51
    %v69 = vmul.f32 %v68, 0.6931472
    %v70 = vsub.f32 %v46, %v69
    %v71 = vsel %vm42, %v41, -inf
    %72 = vmax.xlane.f32.xlu0 %v71
    %v73 = vpop.xlane.xlu0 %72
    %v74 = vsub.f32 %v41, %v73
    %v75 = vmul.f32 %v74, 1.442695
    %v76 = vpow.pop %v75
    %v77 = vsel %vm42, %v76, 0.0
    %78 = vadd.xlane.f32.xlu0 %v77
    %v79 = vpop.xlane.xlu0 %78
    %v80 = vrcp.pop %v79
    %v81 = vmul.f32 %v79, %v80
    %v82 = vsub.f32 1.0, %v81
    %v83 = vmul.f32 %v80, %v82
    %v84 = vadd.f32 %v80, %v83
    %vm85 = vweird.f32 %v79
    %vm86 = vweird.f32 %v80
    %vm87 = vmor %vm85, %vm86
    %v88 = vsel %vm87, %v80, %v84
    %v89 = vand.u32 2147483647, %v79
    %vm90 = vcmp.eq.f32.partialorder %v89, 8.507059e+37
    %v91 = vand.u32 %v79, 2147483648
    %v92 = vor.u32 1.1754944e-38, %v91
    %v93 = vsel %vm90, %v92, %v88
    %v94 = vmul.f32 1.0, %v93
    %v95 = vmul.f32 %v76, %v94
    %v96 = vlog2.pop %v79
    %v97 = vmul.f32 %v96, 0.6931472
    %v98 = vsub.f32 %v74, %v97
    %v99 = vadd.f32 %v67, %v95
    %v100 = vmul.f32 %v99, 0.5
    %vm101 = vcmp.gt.f32.partialorder %v100, 0.0
    %v102 = vsel %vm101, %v100, 1.0
    %v103 = vlog2.pop %v102
    %v104 = vmul.f32 %v103, 0.6931472
    %v105 = vmul.f32 %v104, 2.0
    %v106 = vsub.f32 %v105, %v70
    %v107 = vsub.f32 %v106, %v98
    %v108 = vmul.f32 %v100, %v107
    %v109 = vsel %vm42, %v108, 0.0
    %110 = vadd.xlane.f32.xlu0 %v109
    %v111 = vpop.xlane.xlu0 %110
    %s112 = smul.u32 0, 8
    %v113 = vlaneseq
    %v114 = vshrl.u32 %v113, 7
    %v115 = vstv %s112
    %v116 = vadd.s32 %v115, %v114
    %vm117 = vcmp.lt.s32.totalorder %v116, 8
    %v118 = vsel %vm117, %v111, 0.0
    %vm119 = vcmask 7168
    %v120 = vsel %vm119, %v118, 0.0
    %121 = vadd.xlane.f32.xlu0 %v120
    %v122 = vpop.xlane.xlu0 %121
    %v123 = vrot.slane %v122, 4
    %v124 = vadd.f32 %v122, %v123
    %v125 = vrot.slane %v124, 2
    %v126 = vadd.f32 %v124, %v125
    %v127 = vrot.slane %v126, 1
    %v128 = vadd.f32 %v126, %v127
    %s129 = vtos %v128
    %s130 = scalar_lea.smem [#allocation7], 0
    %131 = sst [smem:[%s130]] %s129
    // Predicated region
    $region18: #{tpu_custom_call.1} parent=1 // pred_check
      _
    $region19: #{tpu_custom_call.1} parent=1 // pred_check_branch
      %133 = sbr.rel (0) target = $region21
    $region20: #{tpu_custom_call.1} parent=1 // pred_region
      %135 = vsyncadd [#allocation4], 0
      %s137 = sshll.u32 %s2, 4
      %s138 = int_to_ptr.hbm [resolvable:$true] %s137
      %140 = dma.smem_to_hbm [#allocation7], 16, %s138, [#allocation4]
    $region21: #{tpu_custom_call.1} parent=1 // pred_fallthru
      _
    // Predicated region
    $region22: #{tpu_custom_call.1} parent=1 // pred_check
      _
    $region23: #{tpu_custom_call.1} parent=1 // pred_check_branch
      %142 = sbr.rel (0) target = $region25
    $region24: #{tpu_custom_call.1} parent=1 // pred_region
      %144 = dma.done [#allocation4], 16
    $region25: #{tpu_custom_call.1} parent=1 // pred_fallthru
      _
    %145 = sfence
    %146 = vsyncpa [#allocation3], 1
    %147 = vsyncpa [#allocation6], 1
    %148 = vsyncpa [#allocation4], 1

</llo_original>
